<compile_context>
chip_gen: v7x
topology: tpu7x:2x2x1
jax: 0.10.0
libtpu: 0.0.40
codegen_flags: <defaults>
</compile_context>

<pallas_src>
import jax
import jax.numpy as jnp
from jax.experimental import pallas as pl
from jax.experimental.pallas import tpu as pltpu

_ALPHA = 1.0
_THR = _ALPHA - _ALPHA / 3.0          # 2/3
_LANE_CANDIDATES = (4096, 2048, 1024, 512, 256, 128)
_TARGET_BLOCK_BYTES = 4 * 1024 * 1024  # ~4 MiB blocks
_VMEM_LIMIT_BYTES = 40 * 1024 * 1024   # explicit scoped-VMEM limit (fits all gens)
_SUBLANE_BY_ITEMSIZE = {4: 8, 2: 16, 1: 32}


def _quant_math(x):
    """Elementwise hardtanh -> SAWB 2-bit (alpha=1).  Used by kernel and tail."""
    dt = x.dtype
    # f16: compare against exact f32 thresholds (one-ULP parity with a float
    # reference).  f32/bf16: compare in the input dtype (no extra VPU work).
    cmp_dt = jnp.float32 if dt == jnp.float16 else dt
    xc = x.astype(cmp_dt)
    thr = jnp.asarray(_THR, cmp_dt)
    zero = jnp.asarray(0.0, cmp_dt)
    one = jnp.asarray(_ALPHA, dt)
    third = jnp.asarray(_ALPHA / 3.0, dt)
    # Exact sequential-mask semantics (asymmetric boundary at -2/3):
    #   x >= thr -> +1 ; 0 <= x < thr -> +1/3 ; -thr <= x < 0 -> -1/3 ; x < -thr -> -1
    pos_q = jnp.where(xc >= thr, one, third)
    neg_q = jnp.where(xc < -thr, -one, -third)
    return jnp.where(xc >= zero, pos_q, neg_q)


def _hardtanh2bit_kernel(x_ref, o_ref):
    o_ref[...] = _quant_math(x_ref[...]).astype(o_ref.dtype)


def _pick_lane(n, sub):
    """Widest lane (multiple of 128) dividing n; prefer rows >= sublane multiple."""
    for cand in _LANE_CANDIDATES:
        if n % cand == 0 and (n // cand) >= sub:
            return cand
    for cand in _LANE_CANDIDATES:
        if n % cand == 0:
            return cand
    return None


def _num_tensorcores():
    """Best-effort TensorCores-per-device (2 on v7x / v4 megacore, else 1)."""
    try:
        dev = jax.devices()[0]
        if getattr(dev, "platform", "") != "tpu":
            return 1
        kind = str(getattr(dev, "device_kind", "")).lower()
        if "v7" in kind or "v4" in kind:
            return 2
    except Exception:
        pass
    return 1


def _choose_row_block(rows, sub, lane, itemsize, multi_core):
    if rows <= sub:
        return rows  # single full-extent block (full dims exempt from (8,128) rule)
    max_units = max(1, (_TARGET_BLOCK_BYTES // (lane * itemsize)) // sub)
    units = pl.cdiv(rows, sub)  # rows measured in sublane tiles
    if not multi_core:
        # Single TensorCore: splitting is a serial loop -> one full block when
        # it fits the VMEM budget.
        if units <= max_units:
            return rows
        return max_units * sub
    # Two TensorCores: want an even grid-step count (>=4 when rows allow) so the
    # "parallel" axis balances across cores and each core still pipelines.
    steps = max(pl.cdiv(units, max_units), 2)
    if units >= 4:
        steps = max(steps, 4)
    steps = min(steps, units)
    for s in range(steps, min(units, steps + 4) + 1):
        rb_units = pl.cdiv(units, s)
        if pl.cdiv(units, rb_units) % 2 == 0:
            return rb_units * sub
    return pl.cdiv(units, steps) * sub  # parity not achievable; accept odd grid


def hardtanh2bit(x: jax.Array, *, donate: bool = False) -> jax.Array:
    """Apply HardTanh2bit elementwise; preserves shape and dtype."""
    orig_shape = x.shape
    dt = x.dtype
    n = x.size
    if n == 0:
        return x

    flat = x.reshape(-1)
    itemsize = jnp.dtype(dt).itemsize
    sub = _SUBLANE_BY_ITEMSIZE.get(itemsize, 8)

    lane = _pick_lane(n, sub)
    if lane is None:
        # n not a multiple of 128: run the kernel on the aligned prefix and
        # quantize the (<128-element) tail in plain jnp -- avoids the old
        # full-array pad copy before the kernel.
        n_tail = n % 128
        n_main = n - n_tail
        tail_q = _quant_math(flat[n_main:])
        if n_main == 0:
            return tail_q.reshape(orig_shape)
        main_q = hardtanh2bit(flat[:n_main]).reshape(-1)
        return jnp.concatenate([main_q, tail_q]).reshape(orig_shape)

    rows = n // lane
    slab = flat.reshape(rows, lane)

    multi_core = _num_tensorcores() > 1
    row_block = _choose_row_block(rows, sub, lane, itemsize, multi_core)
    grid = (pl.cdiv(rows, row_block),)

    out = pl.pallas_call(
        _hardtanh2bit_kernel,
        out_shape=jax.ShapeDtypeStruct((rows, lane), dt),
        grid_spec=pltpu.PrefetchScalarGridSpec(
            num_scalar_prefetch=0,
            grid=grid,
            in_specs=[pl.BlockSpec((row_block, lane), lambda i: (i, 0))],
            out_specs=pl.BlockSpec((row_block, lane), lambda i: (i, 0)),
        ),
        compiler_params=pltpu.CompilerParams(
            dimension_semantics=("parallel",),
            vmem_limit_bytes=_VMEM_LIMIT_BYTES,
        ),
        cost_estimate=pl.CostEstimate(
            flops=6 * n, transcendentals=0, bytes_accessed=2 * n * itemsize),
        input_output_aliases={0: 0} if donate else {},
    )(slab)

    return out.reshape(orig_shape)


if __name__ == "__main__":
    key = jax.random.PRNGKey(0)
    # NCHW input, small shape: batch=2, channels=4, spatial=16x16
    x = jax.random.normal(key, (2, 4, 16, 16), dtype=jnp.float32) * 1.5

    y = jax.block_until_ready(hardtanh2bit(x))
    assert y.shape == x.shape and y.dtype == x.dtype

    # independent pure-JAX reference (hardtanh -> SAWB 2-bit, alpha=1.0)
    xr = jnp.clip(x, -1.0, 1.0)
    thr = 1.0 - 1.0 / 3.0
    ref = jnp.where(
        xr >= 0.0,
        jnp.where(xr >= thr, 1.0, 1.0 / 3.0),
        jnp.where(xr < -thr, -1.0, -1.0 / 3.0),
    )
    assert jnp.allclose(y, ref, atol=1e-6), "mismatch vs reference"

    # outputs must be one of the 4 quant levels
    levels = jnp.array([-1.0, -1.0 / 3.0, 1.0 / 3.0, 1.0])
    assert bool(jnp.all(jnp.min(jnp.abs(y[..., None] - levels), axis=-1) < 1e-6))

    # odd (non-128-multiple) size: exercises the prefix-kernel + jnp-tail path
    x_odd = jax.random.normal(jax.random.PRNGKey(1), (5, 100), dtype=jnp.float32) * 1.5
    y_odd = jax.block_until_ready(hardtanh2bit(x_odd))
    assert y_odd.shape == x_odd.shape and y_odd.dtype == x_odd.dtype
    assert jnp.allclose(y_odd, _quant_math(x_odd), atol=1e-6)

    print("KERNEL_OK")
</pallas_src>

<mosaic_0001>
module attributes {stable_mosaic.version = 11 : i64} {
  func.func @_hardtanh2bit_kernel(%arg0: i32, %arg1: memref<8x256xf32, #tpu.memory_space<vmem>>, %arg2: memref<8x256xf32, #tpu.memory_space<vmem>>) attributes {dimension_semantics = [#tpu.dimension_semantics<parallel>], iteration_bounds = array<i64: 1>, scalar_prefetch = 0 : i64, scratch_operands = 0 : i64, tpu.core_type = #tpu.core_type<tc>, window_params = [{transform_indices = @transform_0, window_bounds = array<i64: 8, 256>}, {transform_indices = @transform_1, window_bounds = array<i64: 8, 256>}]} {
    %c0 = arith.constant 0 : index
    %c0_0 = arith.constant 0 : index
    %0 = vector.load %arg1[%c0, %c0_0] : memref<8x256xf32, #tpu.memory_space<vmem>>, vector<8x256xf32>
    %cst = arith.constant 0.666666686 : f32
    %1 = vector.broadcast %cst : f32 to vector<8x256xf32>
    %2 = arith.cmpf oge, %0, %1 : vector<8x256xf32>
    %cst_1 = arith.constant 1.000000e+00 : f32
    %cst_2 = arith.constant 0.333333343 : f32
    %3 = vector.broadcast %cst_1 : f32 to vector<8x256xf32>
    %4 = vector.broadcast %cst_2 : f32 to vector<8x256xf32>
    %5 = arith.select %2, %3, %4 : vector<8x256xi1>, vector<8x256xf32>
    %cst_3 = arith.constant 0.000000e+00 : f32
    %cst_4 = arith.constant 0.666666686 : f32
    %6 = arith.subf %cst_3, %cst_4 : f32
    %7 = vector.broadcast %6 : f32 to vector<8x256xf32>
    %8 = arith.cmpf olt, %0, %7 : vector<8x256xf32>
    %cst_5 = arith.constant 0.000000e+00 : f32
    %cst_6 = arith.constant 1.000000e+00 : f32
    %9 = arith.subf %cst_5, %cst_6 : f32
    %cst_7 = arith.constant 0.000000e+00 : f32
    %cst_8 = arith.constant 0.333333343 : f32
    %10 = arith.subf %cst_7, %cst_8 : f32
    %11 = vector.broadcast %9 : f32 to vector<8x256xf32>
    %12 = vector.broadcast %10 : f32 to vector<8x256xf32>
    %13 = arith.select %8, %11, %12 : vector<8x256xi1>, vector<8x256xf32>
    %cst_9 = arith.constant 0.000000e+00 : f32
    %14 = vector.broadcast %cst_9 : f32 to vector<8x256xf32>
    %15 = arith.cmpf oge, %0, %14 : vector<8x256xf32>
    %16 = arith.select %15, %5, %13 : vector<8x256xi1>, vector<8x256xf32>
    %c0_10 = arith.constant 0 : index
    %c0_11 = arith.constant 0 : index
    %17 = vector.load %arg2[%c0_10, %c0_11] : memref<8x256xf32, #tpu.memory_space<vmem>>, vector<8x256xf32>
    tpu.vector_store %arg2[%c0_10, %c0_11], %16 {strides = array<i32>} : memref<8x256xf32, #tpu.memory_space<vmem>>, vector<8x256xf32>,
    return
  }
  func.func @transform_0(%arg0: i32) -> (i32, i32) {
    %c0_i32 = arith.constant 0 : i32
    %c0_i32_0 = arith.constant 0 : i32
    return %arg0, %c0_i32 : i32, i32
  }
  func.func @transform_1(%arg0: i32) -> (i32, i32) {
    %c0_i32 = arith.constant 0 : i32
    %c0_i32_0 = arith.constant 0 : i32
    return %arg0, %c0_i32 : i32, i32
  }
}

</mosaic_0001>

<llo_original>
// kernel: tpu_custom_call.1
$region0: #{tpu_custom_call.1}
  #allocation0 [shape = 'u32[]', space=smem, size = 0x4, offset = 0x4, fixed_abs, tag = 'smem constant byte address 0x4 - core index']
  #allocation1 [shape = 'u32[144,128]{1,0:T(1,128)}', space=vmem, size = 0x12000, scoped, tag = 'internal scratch']
  %s0 = inlined_call_operand.hbm [shape: f32[8,256], index: 0, kind: input, shape index: {}]
  %s1 = inlined_call_operand.hbm [shape: f32[8,256], index: 1, kind: output, shape index: {}]
  %s2 = sld [smem:[#allocation0]]
  $region18: #{tpu_custom_call.1} parent=0
    _
  %s4 = ssub.s32 1, %s2
  %s5 = scalar_select 0, %s4, %s2
  $region1: #{tpu_custom_call.1} parent=0
    #allocation2 [shape = 'u8[8192]{0}', space=vmem, size = 0x2000, scoped, tag = 'input window, operand 0, single buffered']
    #allocation3 [shape = 's32[1]{0}', space=sflag, size = 0x4, scoped, tag = 'scoped memory for tpu_custom_call.1']
    #allocation4 [shape = 's32[1]{0}', space=sflag, size = 0x4, scoped, tag = 'scoped memory for tpu_custom_call.1']
    #allocation5 [shape = 'u8[8192]{0}', space=vmem, size = 0x2000, scoped, tag = 'output window, operand 0, single buffered']
    %6 = vsyncpa [#allocation3], 0
    %7 = vsyncpa [#allocation4], 0
    // Predicated region
    $region2: #{tpu_custom_call.1} parent=1 // pred_check
      _
    $region3: #{tpu_custom_call.1} parent=1 // pred_check_branch
      %9 = sbr.rel (0) target = $region5
    $region4: #{tpu_custom_call.1} parent=1 // pred_region
      %s11 = ssub.s32 256, 256
      %12 = vsyncadd [#allocation3], %s11
      %s14 = sshll.u32 [#allocation2], 4
      %s15 = int_to_ptr.vmem [resolvable:$true] %s14
      %17 = dma.hbm_to_vmem [thread:$0]  %s0, 256, %s15, [#allocation3]
    $region5: #{tpu_custom_call.1} parent=1 // pred_fallthru
      _
    // Predicated region
    $region6: #{tpu_custom_call.1} parent=1 // pred_check
      _
    $region7: #{tpu_custom_call.1} parent=1 // pred_check_branch
      %19 = sbr.rel (0) target = $region9
    $region8: #{tpu_custom_call.1} parent=1 // pred_region
      %20 = dma.done [#allocation3], 256
    $region9: #{tpu_custom_call.1} parent=1 // pred_fallthru
      _
    %v21 = vld [vmem:[#allocation2] sm:$0xff]
    %v22 = vld [vmem:[#allocation2 + $0x8] sm:$0xff]
    %vm23 = vcmp.ge.f32.partialorder %v21, 0.6666667
    %vm24 = vcmp.ge.f32.partialorder %v22, 0.6666667
    %v25 = vsel %vm23, 1.0, 0.33333334
    %v26 = vsel %vm24, 1.0, 0.33333334
    %vm27 = vcmp.lt.f32.partialorder %v21, -0.6666667
    %vm28 = vcmp.lt.f32.partialorder %v22, -0.6666667
    %v29 = vsel %vm27, -1.0, -0.33333334
    %v30 = vsel %vm28, -1.0, -0.33333334
    %vm31 = vcmp.ge.f32.partialorder %v21, 0.0
    %vm32 = vcmp.ge.f32.partialorder %v22, 0.0
    %v33 = vsel %vm31, %v25, %v29
    %v34 = vsel %vm32, %v26, %v30
    %35 = vst [vmem:[#allocation5] sm:$0xff] %v33
    %36 = vst [vmem:[#allocation5 + $0x8] sm:$0xff] %v34
    // Predicated region
    $region10: #{tpu_custom_call.1} parent=1 // pred_check
      _
    $region11: #{tpu_custom_call.1} parent=1 // pred_check_branch
      %38 = sbr.rel (0) target = $region13
    $region12: #{tpu_custom_call.1} parent=1 // pred_region
      %s40 = ssub.s32 256, 256
      %41 = vsyncadd [#allocation4], %s40
      %s43 = sshll.u32 [#allocation5], 4
      %s44 = int_to_ptr.vmem [resolvable:$true] %s43
      %46 = dma.vmem_to_hbm [thread:$0]  %s44, 256, %s1, [#allocation4]
    $region13: #{tpu_custom_call.1} parent=1 // pred_fallthru
      _
    // Predicated region
    $region14: #{tpu_custom_call.1} parent=1 // pred_check
      _
    $region15: #{tpu_custom_call.1} parent=1 // pred_check_branch
      %48 = sbr.rel (0) target = $region17
    $region16: #{tpu_custom_call.1} parent=1 // pred_region
      %49 = dma.done [#allocation4], 256
    $region17: #{tpu_custom_call.1} parent=1 // pred_fallthru
      _
    %50 = vsyncpa [#allocation3], 1
    %51 = vsyncpa [#allocation4], 1

</llo_original>
